<compile_context>
chip_gen: v7x
topology: tpu7x:2x2x1
jax: 0.10.0
libtpu: 0.0.40
codegen_flags: <defaults>
</compile_context>

<pallas_src>
import jax
import jax.numpy as jnp
from jax.experimental import pallas as pl
from jax.experimental.pallas import tpu as pltpu

NUM_CLASSES = 3
FEATURE_CHANNELS = 2048   # Conv2d(2048, NUM_CLASSES, 1)
OUT_PAD = 128             # lane-dense padded output width


def _classifier_head_kernel(x_ref, w_ref, o_ref):
    # x_ref: (TB, HW, C)   channels-last features, C=2048 on the lane axis
    # w_ref: (C, OUT_PAD)  1x1 conv weight, transposed + zero-padded to 128 cols
    # o_ref: (TB, OUT_PAD) padded logits (f32)
    hw = x_ref.shape[1]
    # AdaptiveAvgPool2d((1,1)) == mean over spatial positions (sublane reduce).
    # Fold the f32 accumulation dtype into the reduce (no explicit f32 copy).
    pooled = jnp.sum(x_ref[...], axis=1, dtype=jnp.float32) * (1.0 / hw)  # (TB, C)
    # ReLU(inplace=True)
    pooled = jnp.maximum(pooled, 0.0)
    # Conv2d(C, NUM_CLASSES, kernel_size=1) on a 1x1 map == matmul
    # (bias added in the wrapper; weight kept f32 for reference-level accuracy).
    o_ref[...] = jnp.dot(
        pooled, w_ref[...], preferred_element_type=jnp.float32
    ).astype(o_ref.dtype)


def pack_conv_weight(conv_weight):
    """(NUM_CLASSES, 2048, 1, 1) PyTorch Conv2d weight -> (2048, OUT_PAD) f32.

    Call once at init (not per forward). Zero-padding to 128 output columns
    keeps the kernel's output block lane-dense (unmasked stores).
    """
    w_mat = jnp.transpose(
        conv_weight.reshape(NUM_CLASSES, FEATURE_CHANNELS).astype(jnp.float32),
        (1, 0))                                                    # (C, NC)
    return jnp.zeros((FEATURE_CHANNELS, OUT_PAD), jnp.float32).at[
        :, :NUM_CLASSES].set(w_mat)


def _round_up(x, m):
    return -(-x // m) * m


def _vmem_capacity_bytes():
    try:
        return int(pltpu.get_tpu_info().vmem_capacity_bytes)
    except Exception:
        return 64 * 2**20           # conservative (v7x-class) fallback


def _pick_batch_tile(n, per_row_cost, vmem_budget):
    """Batch rows per grid step, sized against this chip's VMEM budget."""
    tb = max(1, int(vmem_budget // per_row_cost))
    # Keep >= 2 grid steps when the batch allows it so the "parallel" batch
    # axis can shard across both TensorCores on v7x.
    if n >= 16:
        tb = min(tb, max(8, ((n // 2) // 8) * 8))
    tb = min(tb, n, 256)
    if tb < n:
        # Output block (tb, 128): tb must be a multiple of 8 when tiling.
        tb = max(8, (tb // 8) * 8)
        # Prefer a tile that divides n (no ragged, masked final block), but
        # never shrink below half of the budgeted tile.
        for t in range(tb, max(8, tb // 2) - 1, -8):
            if n % t == 0:
                tb = t
                break
        tb = min(tb, n)
    return int(tb)


def diynet_classifier(features, w_pad, conv_bias, *, data_format="NHWC"):
    """Pallas implementation of DIYNet's classifier head.

    Args:
      features: backbone layer4 features. Preferred: (N, H, W, 2048)
        channels-last (lane-dense DMA). With data_format="NCHW" an
        (N, 2048, H, W) map is accepted and transposed on entry (one extra
        HBM pass).
      w_pad:     (2048, OUT_PAD) f32 from pack_conv_weight() (built once).
      conv_bias: (NUM_CLASSES,) float32.
    Returns:
      (N, NUM_CLASSES, 1, 1) float32, matching nn.Conv2d output.
    """
    if data_format == "NCHW":
        # TODO(synk): only needed when the external backbone emits NCHW; a
        # channels-last backbone avoids this extra HBM round trip entirely.
        features = jnp.transpose(features, (0, 2, 3, 1))
    n, h, w, c = features.shape
    assert c == FEATURE_CHANNELS
    hw = h * w

    # (N, H, W, C) -> (N, HW, C): contiguous reshape, no extra HBM pass.
    x = features.reshape(n, hw, c)

    # --- VMEM sizing (generation-aware) ---------------------------------
    vmem_capacity = _vmem_capacity_bytes()
    sub_in = 8 * max(1, 4 // x.dtype.itemsize)       # sublane packing of input dtype
    hw_in_pad = _round_up(hw, sub_in)
    hw_f32_pad = _round_up(hw, 8)
    # Per batch row: double-buffered feature stream + a possible f32
    # accumulation temporary created by the upcast-for-reduce.
    per_row_cost = (2 * hw_in_pad * c * x.dtype.itemsize
                    + hw_f32_pad * c * 4)
    vmem_budget = max(vmem_capacity // 2, 8 * 2**20)
    tb = _pick_batch_tile(n, per_row_cost, vmem_budget)

    tb_pad = _round_up(tb, 8)
    vmem_need = (tb * per_row_cost                 # features (x2) + f32 reduce temp
                 + 2 * c * OUT_PAD * 4             # resident (double-buffered) weight
                 + 2 * tb_pad * OUT_PAD * 4        # output block
                 + 2 * tb_pad * c * 4)             # pooled / relu temporaries
    vmem_limit = int(min(max(vmem_need + (4 << 20), 16 << 20),
                         min(96 << 20, vmem_capacity - (16 << 20))))

    out = pl.pallas_call(
        _classifier_head_kernel,
        out_shape=jax.ShapeDtypeStruct((n, OUT_PAD), jnp.float32),
        grid_spec=pltpu.PrefetchScalarGridSpec(
            num_scalar_prefetch=0,
            grid=(pl.cdiv(n, tb),),
            in_specs=[
                # C=2048 on lanes: one contiguous full-burst DMA per batch row.
                pl.BlockSpec((tb, hw, c), lambda i: (i, 0, 0)),
                # Constant index_map: DMA'd once, stays resident across steps.
                pl.BlockSpec((c, OUT_PAD), lambda i: (0, 0)),
            ],
            out_specs=pl.BlockSpec((tb, OUT_PAD), lambda i: (i, 0)),
        ),
        compiler_params=pltpu.CompilerParams(
            dimension_semantics=("parallel",),   # batch axis shards across v7x's 2 TCs
            vmem_limit_bytes=vmem_limit,
        ),
    )(x, w_pad)

    # Slice away lane padding, add bias (12 bytes — cheaper in the wrapper),
    # and match PyTorch Conv2d output shape (N, NUM_CLASSES, 1, 1).
    logits = out[:, :NUM_CLASSES] + conv_bias.astype(jnp.float32)[None, :]
    return logits.reshape(n, NUM_CLASSES, 1, 1)


def _reference(features_nhwc, conv_weight, conv_bias):
    pooled = jnp.mean(features_nhwc.astype(jnp.float32), axis=(1, 2))    # (N, C)
    pooled = jnp.maximum(pooled, 0.0)
    wmat = conv_weight.reshape(NUM_CLASSES, FEATURE_CHANNELS)            # (NC, C)
    out = pooled @ wmat.T + conv_bias
    return out.reshape(-1, NUM_CLASSES, 1, 1)


if __name__ == "__main__":
    key = jax.random.PRNGKey(0)
    k_x, k_w, k_b = jax.random.split(key, 3)

    # Small, forward-consistent shapes: batch=2, 2048 channels (fixed by the
    # Conv2d), small 4x4 spatial map (stand-in for ResNet layer4 output).
    N, H, W, C = 2, 4, 4, FEATURE_CHANNELS

    # Channels-last bf16 features (as a JAX backbone would naturally emit):
    # lane-dense DMA and half the HBM traffic of f32.
    features = jax.random.normal(k_x, (N, H, W, C), dtype=jnp.float32).astype(
        jnp.bfloat16)
    conv_weight = 0.02 * jax.random.normal(
        k_w, (NUM_CLASSES, C, 1, 1), dtype=jnp.float32)
    conv_bias = 0.1 * jax.random.normal(k_b, (NUM_CLASSES,), dtype=jnp.float32)

    w_pad = pack_conv_weight(conv_weight)      # built once, outside the forward path
    out = diynet_classifier(features, w_pad, conv_bias)
    out = jax.block_until_ready(out)

    ref = _reference(features, conv_weight, conv_bias)
    assert out.shape == (N, NUM_CLASSES, 1, 1)
    assert jnp.allclose(out, ref, atol=2e-3, rtol=2e-3)

    print("KERNEL_OK")
</pallas_src>

<mosaic_0001>
module attributes {stable_mosaic.version = 11 : i64} {
  func.func @_classifier_head_kernel(%arg0: i32, %arg1: memref<2x16x2048xbf16, #tpu.memory_space<vmem>>, %arg2: memref<2048x128xf32, #tpu.memory_space<vmem>>, %arg3: memref<2x128xf32, #tpu.memory_space<vmem>>) attributes {dimension_semantics = [#tpu.dimension_semantics<parallel>], iteration_bounds = array<i64: 1>, scalar_prefetch = 0 : i64, scratch_operands = 0 : i64, tpu.core_type = #tpu.core_type<tc>, window_params = [{transform_indices = @transform_0, window_bounds = array<i64: 2, 16, 2048>}, {pipeline_mode = #tpu.pipeline_mode<synchronous>, transform_indices = @transform_1, window_bounds = array<i64: 2048, 128>}, {transform_indices = @transform_2, window_bounds = array<i64: 2, 128>}]} {
    %c0 = arith.constant 0 : index
    %c0_0 = arith.constant 0 : index
    %c0_1 = arith.constant 0 : index
    %0 = vector.load %arg1[%c0, %c0_0, %c0_1] : memref<2x16x2048xbf16, #tpu.memory_space<vmem>>, vector<2x16x2048xbf16>
    %1 = arith.extf %0 : vector<2x16x2048xbf16> to vector<2x16x2048xf32>
    %cst = arith.constant dense<0.000000e+00> : vector<2x2048xf32>
    %2 = vector.multi_reduction <add>, %1, %cst [1] : vector<2x16x2048xf32> to vector<2x2048xf32>
    %cst_2 = arith.constant 6.250000e-02 : f32
    %3 = vector.broadcast %cst_2 : f32 to vector<2x2048xf32>
    %4 = arith.mulf %2, %3 : vector<2x2048xf32>
    %cst_3 = arith.constant 0.000000e+00 : f32
    %5 = vector.broadcast %cst_3 : f32 to vector<2x2048xf32>
    %6 = arith.maximumf %4, %5 : vector<2x2048xf32>
    %c0_4 = arith.constant 0 : index
    %c0_5 = arith.constant 0 : index
    %7 = vector.load %arg2[%c0_4, %c0_5] : memref<2048x128xf32, #tpu.memory_space<vmem>>, vector<2048x128xf32>
    %cst_6 = arith.constant dense<0.000000e+00> : vector<2x128xf32>
    %8 = tpu.matmul %6, %7, %cst_6 {dimension_numbers = #tpu.dot_dimension_numbers<[1], [0], [0], [1], [0, 0, 1, 1], [], []>} : vector<2x2048xf32>, vector<2048x128xf32>, vector<2x128xf32> -> vector<2x128xf32>
    %c0_7 = arith.constant 0 : index
    %c0_8 = arith.constant 0 : index
    %9 = vector.load %arg3[%c0_7, %c0_8] : memref<2x128xf32, #tpu.memory_space<vmem>>, vector<2x128xf32>
    tpu.vector_store %arg3[%c0_7, %c0_8], %8 {strides = array<i32>} : memref<2x128xf32, #tpu.memory_space<vmem>>, vector<2x128xf32>,
    return
  }
  func.func @transform_0(%arg0: i32) -> (i32, i32, i32) {
    %c0_i32 = arith.constant 0 : i32
    %c0_i32_0 = arith.constant 0 : i32
    %c0_i32_1 = arith.constant 0 : i32
    return %arg0, %c0_i32, %c0_i32_0 : i32, i32, i32
  }
  func.func @transform_1(%arg0: i32) -> (i32, i32) {
    %c0_i32 = arith.constant 0 : i32
    %c0_i32_0 = arith.constant 0 : i32
    %c0_i32_1 = arith.constant 0 : i32
    return %c0_i32, %c0_i32_0 : i32, i32
  }
  func.func @transform_2(%arg0: i32) -> (i32, i32) {
    %c0_i32 = arith.constant 0 : i32
    %c0_i32_0 = arith.constant 0 : i32
    return %arg0, %c0_i32 : i32, i32
  }
}

</mosaic_0001>

<llo_original>
// kernel: tpu_custom_call.1
$region0: #{tpu_custom_call.1}
  #allocation0 [shape = 'u32[]', space=smem, size = 0x4, offset = 0x4, fixed_abs, tag = 'smem constant byte address 0x4 - core index']
  #allocation1 [shape = 'u32[144,128]{1,0:T(1,128)}', space=vmem, size = 0x12000, scoped, tag = 'internal scratch']
  %s0 = inlined_call_operand.hbm [shape: bf16[2,16,2048], index: 0, kind: input, shape index: {}]
  %s1 = inlined_call_operand.hbm [shape: f32[2048,128], index: 1, kind: input, shape index: {}]
  %s2 = inlined_call_operand.hbm [shape: f32[2,128], index: 2, kind: output, shape index: {}]
  %s3 = sld [smem:[#allocation0]]
  $region26: #{tpu_custom_call.1} parent=0
    _
  %s5 = ssub.s32 1, %s3
  %s6 = scalar_select 0, %s5, %s3
  $region1: #{tpu_custom_call.1} parent=0
    #allocation2 [shape = 'u8[131072]{0}', space=vmem, size = 0x20000, scoped, tag = 'input window, operand 0, single buffered']
    #allocation3 [shape = 's32[1]{0}', space=sflag, size = 0x4, scoped, tag = 'scoped memory for tpu_custom_call.1']
    #allocation4 [shape = 's32[1]{0}', space=sflag, size = 0x4, scoped, tag = 'scoped memory for tpu_custom_call.1']
    #allocation5 [shape = 'u8[1048576]{0}', space=vmem, size = 0x100000, scoped, tag = 'input window, operand 1, single buffered']
    #allocation6 [shape = 's32[1]{0}', space=sflag, size = 0x4, scoped, tag = 'scoped memory for tpu_custom_call.1']
    #allocation7 [shape = 'u8[1024]{0}', space=vmem, size = 0x400, scoped, tag = 'output window, operand 0, single buffered']
    %7 = vsyncpa [#allocation3], 0
    %8 = vsyncpa [#allocation6], 0
    %9 = vsyncpa [#allocation4], 0
    // Predicated region
    $region2: #{tpu_custom_call.1} parent=1 // pred_check
      _
    $region3: #{tpu_custom_call.1} parent=1 // pred_check_branch
      %11 = sbr.rel (0) target = $region5
    $region4: #{tpu_custom_call.1} parent=1 // pred_region
      %s13 = ssub.s32 4096, 4096
      %14 = vsyncadd [#allocation3], %s13
      %s15 = sshll.u32 [#allocation2], 4
      %s16 = int_to_ptr.vmem [resolvable:$true] %s15
      %21 = dma.hbm_to_vmem [thread:$0]  %s0, 4096, %s16, [#allocation3], 1024, 1024, 64
    $region5: #{tpu_custom_call.1} parent=1 // pred_fallthru
      _
    // Predicated region
    $region6: #{tpu_custom_call.1} parent=1 // pred_check
      _
    $region7: #{tpu_custom_call.1} parent=1 // pred_check_branch
      %23 = sbr.rel (0) target = $region9
    $region8: #{tpu_custom_call.1} parent=1 // pred_region
      %s25 = ssub.s32 32768, 32768
      %26 = vsyncadd [#allocation6], %s25
      %s27 = sshll.u32 [#allocation5], 4
      %s28 = int_to_ptr.vmem [resolvable:$true] %s27
      %33 = dma.hbm_to_vmem [thread:$0]  %s1, 32768, %s28, [#allocation6], 128, 128, 8
    $region9: #{tpu_custom_call.1} parent=1 // pred_fallthru
      _
    // Predicated region
    $region10: #{tpu_custom_call.1} parent=1 // pred_check
      _
    $region11: #{tpu_custom_call.1} parent=1 // pred_check_branch
      %35 = sbr.rel (0) target = $region13
    $region12: #{tpu_custom_call.1} parent=1 // pred_region
      %36 = dma.done [#allocation3], 4096
    $region13: #{tpu_custom_call.1} parent=1 // pred_fallthru
      _
    // Predicated region
    $region14: #{tpu_custom_call.1} parent=1 // pred_check
      _
    $region15: #{tpu_custom_call.1} parent=1 // pred_check_branch
      %38 = sbr.rel (0) target = $region17
    $region16: #{tpu_custom_call.1} parent=1 // pred_region
      %39 = dma.done [#allocation6], 32768
    $region17: #{tpu_custom_call.1} parent=1 // pred_fallthru
      _
    %v40 = vld [vmem:[#allocation2] sm:$0xff]
    %v41 = vld [vmem:[#allocation2 + $0x8] sm:$0xff]
    %v42 = vld [vmem:[#allocation2 + $0x10] sm:$0xff]
    %v43 = vld [vmem:[#allocation2 + $0x18] sm:$0xff]
    %v44 = vld [vmem:[#allocation2 + $0x20] sm:$0xff]
    %v45 = vld [vmem:[#allocation2 + $0x28] sm:$0xff]
    %v46 = vld [vmem:[#allocation2 + $0x30] sm:$0xff]
    %v47 = vld [vmem:[#allocation2 + $0x38] sm:$0xff]
    %v48 = vld [vmem:[#allocation2 + $0x40] sm:$0xff]
    %v49 = vld [vmem:[#allocation2 + $0x48] sm:$0xff]
    %v50 = vld [vmem:[#allocation2 + $0x50] sm:$0xff]
    %v51 = vld [vmem:[#allocation2 + $0x58] sm:$0xff]
    %v52 = vld [vmem:[#allocation2 + $0x60] sm:$0xff]
    %v53 = vld [vmem:[#allocation2 + $0x68] sm:$0xff]
    %v54 = vld [vmem:[#allocation2 + $0x70] sm:$0xff]
    %v55 = vld [vmem:[#allocation2 + $0x78] sm:$0xff]
    %v56 = vld [vmem:[#allocation2 + $0x80] sm:$0xff]
    %v57 = vld [vmem:[#allocation2 + $0x88] sm:$0xff]
    %v58 = vld [vmem:[#allocation2 + $0x90] sm:$0xff]
    %v59 = vld [vmem:[#allocation2 + $0x98] sm:$0xff]
    %v60 = vld [vmem:[#allocation2 + $0xa0] sm:$0xff]
    %v61 = vld [vmem:[#allocation2 + $0xa8] sm:$0xff]
    %v62 = vld [vmem:[#allocation2 + $0xb0] sm:$0xff]
    %v63 = vld [vmem:[#allocation2 + $0xb8] sm:$0xff]
    %v64 = vld [vmem:[#allocation2 + $0xc0] sm:$0xff]
    %v65 = vld [vmem:[#allocation2 + $0xc8] sm:$0xff]
    %v66 = vld [vmem:[#allocation2 + $0xd0] sm:$0xff]
    %v67 = vld [vmem:[#allocation2 + $0xd8] sm:$0xff]
    %v68 = vld [vmem:[#allocation2 + $0xe0] sm:$0xff]
    %v69 = vld [vmem:[#allocation2 + $0xe8] sm:$0xff]
    %v70 = vld [vmem:[#allocation2 + $0xf0] sm:$0xff]
    %v71 = vld [vmem:[#allocation2 + $0xf8] sm:$0xff]
    %v72 = vunpack.c.l.bf16 %v40
    %v73 = vunpack.c.h.bf16 %v40
    %v74 = vunpack.c.l.bf16 %v41
    %v75 = vunpack.c.h.bf16 %v41
    %v76 = vunpack.c.l.bf16 %v42
    %v77 = vunpack.c.h.bf16 %v42
    %v78 = vunpack.c.l.bf16 %v43
    %v79 = vunpack.c.h.bf16 %v43
    %v80 = vunpack.c.l.bf16 %v44
    %v81 = vunpack.c.h.bf16 %v44
    %v82 = vunpack.c.l.bf16 %v45
    %v83 = vunpack.c.h.bf16 %v45
    %v84 = vunpack.c.l.bf16 %v46
    %v85 = vunpack.c.h.bf16 %v46
    %v86 = vunpack.c.l.bf16 %v47
    %v87 = vunpack.c.h.bf16 %v47
    %v88 = vunpack.c.l.bf16 %v48
    %v89 = vunpack.c.h.bf16 %v48
    %v90 = vunpack.c.l.bf16 %v49
    %v91 = vunpack.c.h.bf16 %v49
    %v92 = vunpack.c.l.bf16 %v50
    %v93 = vunpack.c.h.bf16 %v50
    %v94 = vunpack.c.l.bf16 %v51
    %v95 = vunpack.c.h.bf16 %v51
    %v96 = vunpack.c.l.bf16 %v52
    %v97 = vunpack.c.h.bf16 %v52
    %v98 = vunpack.c.l.bf16 %v53
    %v99 = vunpack.c.h.bf16 %v53
    %v100 = vunpack.c.l.bf16 %v54
    %v101 = vunpack.c.h.bf16 %v54
    %v102 = vunpack.c.l.bf16 %v55
    %v103 = vunpack.c.h.bf16 %v55
    %v104 = vunpack.c.l.bf16 %v56
    %v105 = vunpack.c.h.bf16 %v56
    %v106 = vunpack.c.l.bf16 %v57
    %v107 = vunpack.c.h.bf16 %v57
    %v108 = vunpack.c.l.bf16 %v58
    %v109 = vunpack.c.h.bf16 %v58
    %v110 = vunpack.c.l.bf16 %v59
    %v111 = vunpack.c.h.bf16 %v59
    %v112 = vunpack.c.l.bf16 %v60
    %v113 = vunpack.c.h.bf16 %v60
    %v114 = vunpack.c.l.bf16 %v61
    %v115 = vunpack.c.h.bf16 %v61
    %v116 = vunpack.c.l.bf16 %v62
    %v117 = vunpack.c.h.bf16 %v62
    %v118 = vunpack.c.l.bf16 %v63
    %v119 = vunpack.c.h.bf16 %v63
    %v120 = vunpack.c.l.bf16 %v64
    %v121 = vunpack.c.h.bf16 %v64
    %v122 = vunpack.c.l.bf16 %v65
    %v123 = vunpack.c.h.bf16 %v65
    %v124 = vunpack.c.l.bf16 %v66
    %v125 = vunpack.c.h.bf16 %v66
    %v126 = vunpack.c.l.bf16 %v67
    %v127 = vunpack.c.h.bf16 %v67
    %v128 = vunpack.c.l.bf16 %v68
    %v129 = vunpack.c.h.bf16 %v68
    %v130 = vunpack.c.l.bf16 %v69
    %v131 = vunpack.c.h.bf16 %v69
    %v132 = vunpack.c.l.bf16 %v70
    %v133 = vunpack.c.h.bf16 %v70
    %v134 = vunpack.c.l.bf16 %v71
    %v135 = vunpack.c.h.bf16 %v71
    %v136 = vadd.f32 %v72, %v88
    %v137 = vrot.slane %v136, 4
    %v138 = vadd.f32 %v136, %v137
    %v139 = vrot.slane %v138, 2
    %v140 = vadd.f32 %v138, %v139
    %v141 = vrot.slane %v140, 1
    %v142 = vadd.f32 %v140, %v141
    %v143 = vadd.f32 %v73, %v89
    %v144 = vrot.slane %v143, 4
    %v145 = vadd.f32 %v143, %v144
    %v146 = vrot.slane %v145, 2
    %v147 = vadd.f32 %v145, %v146
    %v148 = vrot.slane %v147, 1
    %v149 = vadd.f32 %v147, %v148
    %v150 = vadd.f32 %v74, %v90
    %v151 = vrot.slane %v150, 4
    %v152 = vadd.f32 %v150, %v151
    %v153 = vrot.slane %v152, 2
    %v154 = vadd.f32 %v152, %v153
    %v155 = vrot.slane %v154, 1
    %v156 = vadd.f32 %v154, %v155
    %v157 = vadd.f32 %v75, %v91
    %v158 = vrot.slane %v157, 4
    %v159 = vadd.f32 %v157, %v158
    %v160 = vrot.slane %v159, 2
    %v161 = vadd.f32 %v159, %v160
    %v162 = vrot.slane %v161, 1
    %v163 = vadd.f32 %v161, %v162
    %v164 = vadd.f32 %v76, %v92
    %v165 = vrot.slane %v164, 4
    %v166 = vadd.f32 %v164, %v165
    %v167 = vrot.slane %v166, 2
    %v168 = vadd.f32 %v166, %v167
    %v169 = vrot.slane %v168, 1
    %v170 = vadd.f32 %v168, %v169
    %v171 = vadd.f32 %v77, %v93
    %v172 = vrot.slane %v171, 4
    %v173 = vadd.f32 %v171, %v172
    %v174 = vrot.slane %v173, 2
    %v175 = vadd.f32 %v173, %v174
    %v176 = vrot.slane %v175, 1
    %v177 = vadd.f32 %v175, %v176
    %v178 = vadd.f32 %v78, %v94
    %v179 = vrot.slane %v178, 4
    %v180 = vadd.f32 %v178, %v179
    %v181 = vrot.slane %v180, 2
    %v182 = vadd.f32 %v180, %v181
    %v183 = vrot.slane %v182, 1
    %v184 = vadd.f32 %v182, %v183
    %v185 = vadd.f32 %v79, %v95
    %v186 = vrot.slane %v185, 4
    %v187 = vadd.f32 %v185, %v186
    %v188 = vrot.slane %v187, 2
    %v189 = vadd.f32 %v187, %v188
    %v190 = vrot.slane %v189, 1
    %v191 = vadd.f32 %v189, %v190
    %v192 = vadd.f32 %v80, %v96
    %v193 = vrot.slane %v192, 4
    %v194 = vadd.f32 %v192, %v193
    %v195 = vrot.slane %v194, 2
    %v196 = vadd.f32 %v194, %v195
    %v197 = vrot.slane %v196, 1
    %v198 = vadd.f32 %v196, %v197
    %v199 = vadd.f32 %v81, %v97
    %v200 = vrot.slane %v199, 4
    %v201 = vadd.f32 %v199, %v200
    %v202 = vrot.slane %v201, 2
    %v203 = vadd.f32 %v201, %v202
    %v204 = vrot.slane %v203, 1
    %v205 = vadd.f32 %v203, %v204
    %v206 = vadd.f32 %v82, %v98
    %v207 = vrot.slane %v206, 4
    %v208 = vadd.f32 %v206, %v207
    %v209 = vrot.slane %v208, 2
    %v210 = vadd.f32 %v208, %v209
    %v211 = vrot.slane %v210, 1
    %v212 = vadd.f32 %v210, %v211
    %v213 = vadd.f32 %v83, %v99
    %v214 = vrot.slane %v213, 4
    %v215 = vadd.f32 %v213, %v214
    %v216 = vrot.slane %v215, 2
    %v217 = vadd.f32 %v215, %v216
    %v218 = vrot.slane %v217, 1
    %v219 = vadd.f32 %v217, %v218
    %v220 = vadd.f32 %v84, %v100
    %v221 = vrot.slane %v220, 4
    %v222 = vadd.f32 %v220, %v221
    %v223 = vrot.slane %v222, 2
    %v224 = vadd.f32 %v222, %v223
    %v225 = vrot.slane %v224, 1
    %v226 = vadd.f32 %v224, %v225
    %v227 = vadd.f32 %v85, %v101
    %v228 = vrot.slane %v227, 4
    %v229 = vadd.f32 %v227, %v228
    %v230 = vrot.slane %v229, 2
    %v231 = vadd.f32 %v229, %v230
    %v232 = vrot.slane %v231, 1
    %v233 = vadd.f32 %v231, %v232
    %v234 = vadd.f32 %v86, %v102
    %v235 = vrot.slane %v234, 4
    %v236 = vadd.f32 %v234, %v235
    %v237 = vrot.slane %v236, 2
    %v238 = vadd.f32 %v236, %v237
    %v239 = vrot.slane %v238, 1
    %v240 = vadd.f32 %v238, %v239
    %v241 = vadd.f32 %v87, %v103
    %v242 = vrot.slane %v241, 4
    %v243 = vadd.f32 %v241, %v242
    %v244 = vrot.slane %v243, 2
    %v245 = vadd.f32 %v243, %v244
    %v246 = vrot.slane %v245, 1
    %v247 = vadd.f32 %v245, %v246
    %v248 = vadd.f32 %v104, %v120
    %v249 = vrot.slane %v248, 4
    %v250 = vadd.f32 %v248, %v249
    %v251 = vrot.slane %v250, 2
    %v252 = vadd.f32 %v250, %v251
    %v253 = vrot.slane %v252, 1
    %v254 = vadd.f32 %v252, %v253
    %v255 = vadd.f32 %v105, %v121
    %v256 = vrot.slane %v255, 4
    %v257 = vadd.f32 %v255, %v256
    %v258 = vrot.slane %v257, 2
    %v259 = vadd.f32 %v257, %v258
    %v260 = vrot.slane %v259, 1
    %v261 = vadd.f32 %v259, %v260
    %v262 = vadd.f32 %v106, %v122
    %v263 = vrot.slane %v262, 4
    %v264 = vadd.f32 %v262, %v263
    %v265 = vrot.slane %v264, 2
    %v266 = vadd.f32 %v264, %v265
    %v267 = vrot.slane %v266, 1
    %v268 = vadd.f32 %v266, %v267
    %v269 = vadd.f32 %v107, %v123
    %v270 = vrot.slane %v269, 4
    %v271 = vadd.f32 %v269, %v270
    %v272 = vrot.slane %v271, 2
    %v273 = vadd.f32 %v271, %v272
    %v274 = vrot.slane %v273, 1
    %v275 = vadd.f32 %v273, %v274
    %v276 = vadd.f32 %v108, %v124
    %v277 = vrot.slane %v276, 4
    %v278 = vadd.f32 %v276, %v277
    %v279 = vrot.slane %v278, 2
    %v280 = vadd.f32 %v278, %v279
    %v281 = vrot.slane %v280, 1
    %v282 = vadd.f32 %v280, %v281
    %v283 = vadd.f32 %v109, %v125
    %v284 = vrot.slane %v283, 4
    %v285 = vadd.f32 %v283, %v284
    %v286 = vrot.slane %v285, 2
    %v287 = vadd.f32 %v285, %v286
    %v288 = vrot.slane %v287, 1
    %v289 = vadd.f32 %v287, %v288
    %v290 = vadd.f32 %v110, %v126
    %v291 = vrot.slane %v290, 4
    %v292 = vadd.f32 %v290, %v291
    %v293 = vrot.slane %v292, 2
    %v294 = vadd.f32 %v292, %v293
    %v295 = vrot.slane %v294, 1
    %v296 = vadd.f32 %v294, %v295
    %v297 = vadd.f32 %v111, %v127
    %v298 = vrot.slane %v297, 4
    %v299 = vadd.f32 %v297, %v298
    %v300 = vrot.slane %v299, 2
    %v301 = vadd.f32 %v299, %v300
    %v302 = vrot.slane %v301, 1
    %v303 = vadd.f32 %v301, %v302
    %v304 = vadd.f32 %v112, %v128
    %v305 = vrot.slane %v304, 4
    %v306 = vadd.f32 %v304, %v305
    %v307 = vrot.slane %v306, 2
    %v308 = vadd.f32 %v306, %v307
    %v309 = vrot.slane %v308, 1
    %v310 = vadd.f32 %v308, %v309
    %v311 = vadd.f32 %v113, %v129
    %v312 = vrot.slane %v311, 4
    %v313 = vadd.f32 %v311, %v312
    %v314 = vrot.slane %v313, 2
    %v315 = vadd.f32 %v313, %v314
    %v316 = vrot.slane %v315, 1
    %v317 = vadd.f32 %v315, %v316
    %v318 = vadd.f32 %v114, %v130
    %v319 = vrot.slane %v318, 4
    %v320 = vadd.f32 %v318, %v319
    %v321 = vrot.slane %v320, 2
    %v322 = vadd.f32 %v320, %v321
    %v323 = vrot.slane %v322, 1
    %v324 = vadd.f32 %v322, %v323
    %v325 = vadd.f32 %v115, %v131
    %v326 = vrot.slane %v325, 4
    %v327 = vadd.f32 %v325, %v326
    %v328 = vrot.slane %v327, 2
    %v329 = vadd.f32 %v327, %v328
    %v330 = vrot.slane %v329, 1
    %v331 = vadd.f32 %v329, %v330
    %v332 = vadd.f32 %v116, %v132
    %v333 = vrot.slane %v332, 4
    %v334 = vadd.f32 %v332, %v333
    %v335 = vrot.slane %v334, 2
    %v336 = vadd.f32 %v334, %v335
    %v337 = vrot.slane %v336, 1
    %v338 = vadd.f32 %v336, %v337
    %v339 = vadd.f32 %v117, %v133
    %v340 = vrot.slane %v339, 4
    %v341 = vadd.f32 %v339, %v340
    %v342 = vrot.slane %v341, 2
    %v343 = vadd.f32 %v341, %v342
    %v344 = vrot.slane %v343, 1
    %v345 = vadd.f32 %v343, %v344
    %v346 = vadd.f32 %v118, %v134
    %v347 = vrot.slane %v346, 4
    %v348 = vadd.f32 %v346, %v347
    %v349 = vrot.slane %v348, 2
    %v350 = vadd.f32 %v348, %v349
    %v351 = vrot.slane %v350, 1
    %v352 = vadd.f32 %v350, %v351
    %v353 = vadd.f32 %v119, %v135
    %v354 = vrot.slane %v353, 4
    %v355 = vadd.f32 %v353, %v354
    %v356 = vrot.slane %v355, 2
    %v357 = vadd.f32 %v355, %v356
    %v358 = vrot.slane %v357, 1
    %v359 = vadd.f32 %v357, %v358
    %v360 = vmul.f32 %v142, 0.0625
    %v361 = vmul.f32 %v149, 0.0625
    %v362 = vmul.f32 %v156, 0.0625
    %v363 = vmul.f32 %v163, 0.0625
    %v364 = vmul.f32 %v170, 0.0625
    %v365 = vmul.f32 %v177, 0.0625
    %v366 = vmul.f32 %v184, 0.0625
    %v367 = vmul.f32 %v191, 0.0625
    %v368 = vmul.f32 %v198, 0.0625
    %v369 = vmul.f32 %v205, 0.0625
    %v370 = vmul.f32 %v212, 0.0625
    %v371 = vmul.f32 %v219, 0.0625
    %v372 = vmul.f32 %v226, 0.0625
    %v373 = vmul.f32 %v233, 0.0625
    %v374 = vmul.f32 %v240, 0.0625
    %v375 = vmul.f32 %v247, 0.0625
    %v376 = vmul.f32 %v254, 0.0625
    %v377 = vmul.f32 %v261, 0.0625
    %v378 = vmul.f32 %v268, 0.0625
    %v379 = vmul.f32 %v275, 0.0625
    %v380 = vmul.f32 %v282, 0.0625
    %v381 = vmul.f32 %v289, 0.0625
    %v382 = vmul.f32 %v296, 0.0625
    %v383 = vmul.f32 %v303, 0.0625
    %v384 = vmul.f32 %v310, 0.0625
    %v385 = vmul.f32 %v317, 0.0625
    %v386 = vmul.f32 %v324, 0.0625
    %v387 = vmul.f32 %v331, 0.0625
    %v388 = vmul.f32 %v338, 0.0625
    %v389 = vmul.f32 %v345, 0.0625
    %v390 = vmul.f32 %v352, 0.0625
    %v391 = vmul.f32 %v359, 0.0625
    %v392 = vmax.f32 %v360, 0.0
    %v393 = vmax.f32 %v361, 0.0
    %v394 = vmax.f32 %v362, 0.0
    %v395 = vmax.f32 %v363, 0.0
    %v396 = vmax.f32 %v364, 0.0
    %v397 = vmax.f32 %v365, 0.0
    %v398 = vmax.f32 %v366, 0.0
    %v399 = vmax.f32 %v367, 0.0
    %v400 = vmax.f32 %v368, 0.0
    %v401 = vmax.f32 %v369, 0.0
    %v402 = vmax.f32 %v370, 0.0
    %v403 = vmax.f32 %v371, 0.0
    %v404 = vmax.f32 %v372, 0.0
    %v405 = vmax.f32 %v373, 0.0
    %v406 = vmax.f32 %v374, 0.0
    %v407 = vmax.f32 %v375, 0.0
    %v408 = vmax.f32 %v376, 0.0
    %v409 = vmax.f32 %v377, 0.0
    %v410 = vmax.f32 %v378, 0.0
    %v411 = vmax.f32 %v379, 0.0
    %v412 = vmax.f32 %v380, 0.0
    %v413 = vmax.f32 %v381, 0.0
    %v414 = vmax.f32 %v382, 0.0
    %v415 = vmax.f32 %v383, 0.0
    %v416 = vmax.f32 %v384, 0.0
    %v417 = vmax.f32 %v385, 0.0
    %v418 = vmax.f32 %v386, 0.0
    %v419 = vmax.f32 %v387, 0.0
    %v420 = vmax.f32 %v388, 0.0
    %v421 = vmax.f32 %v389, 0.0
    %v422 = vmax.f32 %v390, 0.0
    %v423 = vmax.f32 %v391, 0.0
    %v424 = vld [vmem:[#allocation5] sm:$0xff]
    %v425 = vld [vmem:[#allocation5 + $0x8] sm:$0xff]
    %v426 = vld [vmem:[#allocation5 + $0x10] sm:$0xff]
    %v427 = vld [vmem:[#allocation5 + $0x18] sm:$0xff]
    %v428 = vld [vmem:[#allocation5 + $0x20] sm:$0xff]
    %v429 = vld [vmem:[#allocation5 + $0x28] sm:$0xff]
    %v430 = vld [vmem:[#allocation5 + $0x30] sm:$0xff]
    %v431 = vld [vmem:[#allocation5 + $0x38] sm:$0xff]
    %v432 = vld [vmem:[#allocation5 + $0x40] sm:$0xff]
    %v433 = vld [vmem:[#allocation5 + $0x48] sm:$0xff]
    %v434 = vld [vmem:[#allocation5 + $0x50] sm:$0xff]
    %v435 = vld [vmem:[#allocation5 + $0x58] sm:$0xff]
    %v436 = vld [vmem:[#allocation5 + $0x60] sm:$0xff]
    %v437 = vld [vmem:[#allocation5 + $0x68] sm:$0xff]
    %v438 = vld [vmem:[#allocation5 + $0x70] sm:$0xff]
    %v439 = vld [vmem:[#allocation5 + $0x78] sm:$0xff]
    %v440 = vld [vmem:[#allocation5 + $0x80] sm:$0xff]
    %v441 = vld [vmem:[#allocation5 + $0x88] sm:$0xff]
    %v442 = vld [vmem:[#allocation5 + $0x90] sm:$0xff]
    %v443 = vld [vmem:[#allocation5 + $0x98] sm:$0xff]
    %v444 = vld [vmem:[#allocation5 + $0xa0] sm:$0xff]
    %v445 = vld [vmem:[#allocation5 + $0xa8] sm:$0xff]
    %v446 = vld [vmem:[#allocation5 + $0xb0] sm:$0xff]
    %v447 = vld [vmem:[#allocation5 + $0xb8] sm:$0xff]
    %v448 = vld [vmem:[#allocation5 + $0xc0] sm:$0xff]
    %v449 = vld [vmem:[#allocation5 + $0xc8] sm:$0xff]
    %v450 = vld [vmem:[#allocation5 + $0xd0] sm:$0xff]
    %v451 = vld [vmem:[#allocation5 + $0xd8] sm:$0xff]
    %v452 = vld [vmem:[#allocation5 + $0xe0] sm:$0xff]
    %v453 = vld [vmem:[#allocation5 + $0xe8] sm:$0xff]
    %v454 = vld [vmem:[#allocation5 + $0xf0] sm:$0xff]
    %v455 = vld [vmem:[#allocation5 + $0xf8] sm:$0xff]
    %v456 = vld [vmem:[#allocation5 + $0x100] sm:$0xff]
    %v457 = vld [vmem:[#allocation5 + $0x108] sm:$0xff]
    %v458 = vld [vmem:[#allocation5 + $0x110] sm:$0xff]
    %v459 = vld [vmem:[#allocation5 + $0x118] sm:$0xff]
    %v460 = vld [vmem:[#allocation5 + $0x120] sm:$0xff]
    %v461 = vld [vmem:[#allocation5 + $0x128] sm:$0xff]
    %v462 = vld [vmem:[#allocation5 + $0x130] sm:$0xff]
    %v463 = vld [vmem:[#allocation5 + $0x138] sm:$0xff]
    %v464 = vld [vmem:[#allocation5 + $0x140] sm:$0xff]
    %v465 = vld [vmem:[#allocation5 + $0x148] sm:$0xff]
    %v466 = vld [vmem:[#allocation5 + $0x150] sm:$0xff]
    %v467 = vld [vmem:[#allocation5 + $0x158] sm:$0xff]
    %v468 = vld [vmem:[#allocation5 + $0x160] sm:$0xff]
    %v469 = vld [vmem:[#allocation5 + $0x168] sm:$0xff]
    %v470 = vld [vmem:[#allocation5 + $0x170] sm:$0xff]
    %v471 = vld [vmem:[#allocation5 + $0x178] sm:$0xff]
    %v472 = vld [vmem:[#allocation5 + $0x180] sm:$0xff]
    %v473 = vld [vmem:[#allocation5 + $0x188] sm:$0xff]
    %v474 = vld [vmem:[#allocation5 + $0x190] sm:$0xff]
    %v475 = vld [vmem:[#allocation5 + $0x198] sm:$0xff]
    %v476 = vld [vmem:[#allocation5 + $0x1a0] sm:$0xff]
    %v477 = vld [vmem:[#allocation5 + $0x1a8] sm:$0xff]
    %v478 = vld [vmem:[#allocation5 + $0x1b0] sm:$0xff]
    %v479 = vld [vmem:[#allocation5 + $0x1b8] sm:$0xff]
    %v480 = vld [vmem:[#allocation5 + $0x1c0] sm:$0xff]
    %v481 = vld [vmem:[#allocation5 + $0x1c8] sm:$0xff]
    %v482 = vld [vmem:[#allocation5 + $0x1d0] sm:$0xff]
    %v483 = vld [vmem:[#allocation5 + $0x1d8] sm:$0xff]
    %v484 = vld [vmem:[#allocation5 + $0x1e0] sm:$0xff]
    %v485 = vld [vmem:[#allocation5 + $0x1e8] sm:$0xff]
    %v486 = vld [vmem:[#allocation5 + $0x1f0] sm:$0xff]
    %v487 = vld [vmem:[#allocation5 + $0x1f8] sm:$0xff]
    %v488 = vld [vmem:[#allocation5 + $0x200] sm:$0xff]
    %v489 = vld [vmem:[#allocation5 + $0x208] sm:$0xff]
    %v490 = vld [vmem:[#allocation5 + $0x210] sm:$0xff]
    %v491 = vld [vmem:[#allocation5 + $0x218] sm:$0xff]
    %v492 = vld [vmem:[#allocation5 + $0x220] sm:$0xff]
    %v493 = vld [vmem:[#allocation5 + $0x228] sm:$0xff]
    %v494 = vld [vmem:[#allocation5 + $0x230] sm:$0xff]
    %v495 = vld [vmem:[#allocation5 + $0x238] sm:$0xff]
    %v496 = vld [vmem:[#allocation5 + $0x240] sm:$0xff]
    %v497 = vld [vmem:[#allocation5 + $0x248] sm:$0xff]
    %v498 = vld [vmem:[#allocation5 + $0x250] sm:$0xff]
    %v499 = vld [vmem:[#allocation5 + $0x258] sm:$0xff]
    %v500 = vld [vmem:[#allocation5 + $0x260] sm:$0xff]
    %v501 = vld [vmem:[#allocation5 + $0x268] sm:$0xff]
    %v502 = vld [vmem:[#allocation5 + $0x270] sm:$0xff]
    %v503 = vld [vmem:[#allocation5 + $0x278] sm:$0xff]
    %v504 = vld [vmem:[#allocation5 + $0x280] sm:$0xff]
    %v505 = vld [vmem:[#allocation5 + $0x288] sm:$0xff]
    %v506 = vld [vmem:[#allocation5 + $0x290] sm:$0xff]
    %v507 = vld [vmem:[#allocation5 + $0x298] sm:$0xff]
    %v508 = vld [vmem:[#allocation5 + $0x2a0] sm:$0xff]
    %v509 = vld [vmem:[#allocation5 + $0x2a8] sm:$0xff]
    %v510 = vld [vmem:[#allocation5 + $0x2b0] sm:$0xff]
    %v511 = vld [vmem:[#allocation5 + $0x2b8] sm:$0xff]
    %v512 = vld [vmem:[#allocation5 + $0x2c0] sm:$0xff]
    %v513 = vld [vmem:[#allocation5 + $0x2c8] sm:$0xff]
    %v514 = vld [vmem:[#allocation5 + $0x2d0] sm:$0xff]
    %v515 = vld [vmem:[#allocation5 + $0x2d8] sm:$0xff]
    %v516 = vld [vmem:[#allocation5 + $0x2e0] sm:$0xff]
    %v517 = vld [vmem:[#allocation5 + $0x2e8] sm:$0xff]
    %v518 = vld [vmem:[#allocation5 + $0x2f0] sm:$0xff]
    %v519 = vld [vmem:[#allocation5 + $0x2f8] sm:$0xff]
    %v520 = vld [vmem:[#allocation5 + $0x300] sm:$0xff]
    %v521 = vld [vmem:[#allocation5 + $0x308] sm:$0xff]
    %v522 = vld [vmem:[#allocation5 + $0x310] sm:$0xff]
    %v523 = vld [vmem:[#allocation5 + $0x318] sm:$0xff]
    %v524 = vld [vmem:[#allocation5 + $0x320] sm:$0xff]
    %v525 = vld [vmem:[#allocation5 + $0x328] sm:$0xff]
    %v526 = vld [vmem:[#allocation5 + $0x330] sm:$0xff]
    %v527 = vld [vmem:[#allocation5 + $0x338] sm:$0xff]
    %v528 = vld [vmem:[#allocation5 + $0x340] sm:$0xff]
    %v529 = vld [vmem:[#allocation5 + $0x348] sm:$0xff]
    %v530 = vld [vmem:[#allocation5 + $0x350] sm:$0xff]
    %v531 = vld [vmem:[#allocation5 + $0x358] sm:$0xff]
    %v532 = vld [vmem:[#allocation5 + $0x360] sm:$0xff]
    %v533 = vld [vmem:[#allocation5 + $0x368] sm:$0xff]
    %v534 = vld [vmem:[#allocation5 + $0x370] sm:$0xff]
    %v535 = vld [vmem:[#allocation5 + $0x378] sm:$0xff]
    %v536 = vld [vmem:[#allocation5 + $0x380] sm:$0xff]
    %v537 = vld [vmem:[#allocation5 + $0x388] sm:$0xff]
    %v538 = vld [vmem:[#allocation5 + $0x390] sm:$0xff]
    %v539 = vld [vmem:[#allocation5 + $0x398] sm:$0xff]
    %v540 = vld [vmem:[#allocation5 + $0x3a0] sm:$0xff]
    %v541 = vld [vmem:[#allocation5 + $0x3a8] sm:$0xff]
    %v542 = vld [vmem:[#allocation5 + $0x3b0] sm:$0xff]
    %v543 = vld [vmem:[#allocation5 + $0x3b8] sm:$0xff]
    %v544 = vld [vmem:[#allocation5 + $0x3c0] sm:$0xff]
    %v545 = vld [vmem:[#allocation5 + $0x3c8] sm:$0xff]
    %v546 = vld [vmem:[#allocation5 + $0x3d0] sm:$0xff]
    %v547 = vld [vmem:[#allocation5 + $0x3d8] sm:$0xff]
    %v548 = vld [vmem:[#allocation5 + $0x3e0] sm:$0xff]
    %v549 = vld [vmem:[#allocation5 + $0x3e8] sm:$0xff]
    %v550 = vld [vmem:[#allocation5 + $0x3f0] sm:$0xff]
    %v551 = vld [vmem:[#allocation5 + $0x3f8] sm:$0xff]
    %v552 = vld [vmem:[#allocation5 + $0x400] sm:$0xff]
    %v553 = vld [vmem:[#allocation5 + $0x408] sm:$0xff]
    %v554 = vld [vmem:[#allocation5 + $0x410] sm:$0xff]
    %v555 = vld [vmem:[#allocation5 + $0x418] sm:$0xff]
    %v556 = vld [vmem:[#allocation5 + $0x420] sm:$0xff]
    %v557 = vld [vmem:[#allocation5 + $0x428] sm:$0xff]
    %v558 = vld [vmem:[#allocation5 + $0x430] sm:$0xff]
    %v559 = vld [vmem:[#allocation5 + $0x438] sm:$0xff]
    %v560 = vld [vmem:[#allocation5 + $0x440] sm:$0xff]
    %v561 = vld [vmem:[#allocation5 + $0x448] sm:$0xff]
    %v562 = vld [vmem:[#allocation5 + $0x450] sm:$0xff]
    %v563 = vld [vmem:[#allocation5 + $0x458] sm:$0xff]
    %v564 = vld [vmem:[#allocation5 + $0x460] sm:$0xff]
    %v565 = vld [vmem:[#allocation5 + $0x468] sm:$0xff]
    %v566 = vld [vmem:[#allocation5 + $0x470] sm:$0xff]
    %v567 = vld [vmem:[#allocation5 + $0x478] sm:$0xff]
    %v568 = vld [vmem:[#allocation5 + $0x480] sm:$0xff]
    %v569 = vld [vmem:[#allocation5 + $0x488] sm:$0xff]
    %v570 = vld [vmem:[#allocation5 + $0x490] sm:$0xff]
    %v571 = vld [vmem:[#allocation5 + $0x498] sm:$0xff]
    %v572 = vld [vmem:[#allocation5 + $0x4a0] sm:$0xff]
    %v573 = vld [vmem:[#allocation5 + $0x4a8] sm:$0xff]
    %v574 = vld [vmem:[#allocation5 + $0x4b0] sm:$0xff]
    %v575 = vld [vmem:[#allocation5 + $0x4b8] sm:$0xff]
    %v576 = vld [vmem:[#allocation5 + $0x4c0] sm:$0xff]
    %v577 = vld [vmem:[#allocation5 + $0x4c8] sm:$0xff]
    %v578 = vld [vmem:[#allocation5 + $0x4d0] sm:$0xff]
    %v579 = vld [vmem:[#allocation5 + $0x4d8] sm:$0xff]
    %v580 = vld [vmem:[#allocation5 + $0x4e0] sm:$0xff]
    %v581 = vld [vmem:[#allocation5 + $0x4e8] sm:$0xff]
    %v582 = vld [vmem:[#allocation5 + $0x4f0] sm:$0xff]
    %v583 = vld [vmem:[#allocation5 + $0x4f8] sm:$0xff]
    %v584 = vld [vmem:[#allocation5 + $0x500] sm:$0xff]
    %v585 = vld [vmem:[#allocation5 + $0x508] sm:$0xff]
    %v586 = vld [vmem:[#allocation5 + $0x510] sm:$0xff]
    %v587 = vld [vmem:[#allocation5 + $0x518] sm:$0xff]
    %v588 = vld [vmem:[#allocation5 + $0x520] sm:$0xff]
    %v589 = vld [vmem:[#allocation5 + $0x528] sm:$0xff]
    %v590 = vld [vmem:[#allocation5 + $0x530] sm:$0xff]
    %v591 = vld [vmem:[#allocation5 + $0x538] sm:$0xff]
    %v592 = vld [vmem:[#allocation5 + $0x540] sm:$0xff]
    %v593 = vld [vmem:[#allocation5 + $0x548] sm:$0xff]
    %v594 = vld [vmem:[#allocation5 + $0x550] sm:$0xff]
    %v595 = vld [vmem:[#allocation5 + $0x558] sm:$0xff]
    %v596 = vld [vmem:[#allocation5 + $0x560] sm:$0xff]
    %v597 = vld [vmem:[#allocation5 + $0x568] sm:$0xff]
    %v598 = vld [vmem:[#allocation5 + $0x570] sm:$0xff]
    %v599 = vld [vmem:[#allocation5 + $0x578] sm:$0xff]
    %v600 = vld [vmem:[#allocation5 + $0x580] sm:$0xff]
    %v601 = vld [vmem:[#allocation5 + $0x588] sm:$0xff]
    %v602 = vld [vmem:[#allocation5 + $0x590] sm:$0xff]
    %v603 = vld [vmem:[#allocation5 + $0x598] sm:$0xff]
    %v604 = vld [vmem:[#allocation5 + $0x5a0] sm:$0xff]
    %v605 = vld [vmem:[#allocation5 + $0x5a8] sm:$0xff]
    %v606 = vld [vmem:[#allocation5 + $0x5b0] sm:$0xff]
    %v607 = vld [vmem:[#allocation5 + $0x5b8] sm:$0xff]
    %v608 = vld [vmem:[#allocation5 + $0x5c0] sm:$0xff]
    %v609 = vld [vmem:[#allocation5 + $0x5c8] sm:$0xff]
    %v610 = vld [vmem:[#allocation5 + $0x5d0] sm:$0xff]
    %v611 = vld [vmem:[#allocation5 + $0x5d8] sm:$0xff]
    %v612 = vld [vmem:[#allocation5 + $0x5e0] sm:$0xff]
    %v613 = vld [vmem:[#allocation5 + $0x5e8] sm:$0xff]
    %v614 = vld [vmem:[#allocation5 + $0x5f0] sm:$0xff]
    %v615 = vld [vmem:[#allocation5 + $0x5f8] sm:$0xff]
    %v616 = vld [vmem:[#allocation5 + $0x600] sm:$0xff]
    %v617 = vld [vmem:[#allocation5 + $0x608] sm:$0xff]
    %v618 = vld [vmem:[#allocation5 + $0x610] sm:$0xff]
    %v619 = vld [vmem:[#allocation5 + $0x618] sm:$0xff]
    %v620 = vld [vmem:[#allocation5 + $0x620] sm:$0xff]
    %v621 = vld [vmem:[#allocation5 + $0x628] sm:$0xff]
    %v622 = vld [vmem:[#allocation5 + $0x630] sm:$0xff]
    %v623 = vld [vmem:[#allocation5 + $0x638] sm:$0xff]
    %v624 = vld [vmem:[#allocation5 + $0x640] sm:$0xff]
    %v625 = vld [vmem:[#allocation5 + $0x648] sm:$0xff]
    %v626 = vld [vmem:[#allocation5 + $0x650] sm:$0xff]
    %v627 = vld [vmem:[#allocation5 + $0x658] sm:$0xff]
    %v628 = vld [vmem:[#allocation5 + $0x660] sm:$0xff]
    %v629 = vld [vmem:[#allocation5 + $0x668] sm:$0xff]
    %v630 = vld [vmem:[#allocation5 + $0x670] sm:$0xff]
    %v631 = vld [vmem:[#allocation5 + $0x678] sm:$0xff]
    %v632 = vld [vmem:[#allocation5 + $0x680] sm:$0xff]
    %v633 = vld [vmem:[#allocation5 + $0x688] sm:$0xff]
    %v634 = vld [vmem:[#allocation5 + $0x690] sm:$0xff]
    %v635 = vld [vmem:[#allocation5 + $0x698] sm:$0xff]
    %v636 = vld [vmem:[#allocation5 + $0x6a0] sm:$0xff]
    %v637 = vld [vmem:[#allocation5 + $0x6a8] sm:$0xff]
    %v638 = vld [vmem:[#allocation5 + $0x6b0] sm:$0xff]
    %v639 = vld [vmem:[#allocation5 + $0x6b8] sm:$0xff]
    %v640 = vld [vmem:[#allocation5 + $0x6c0] sm:$0xff]
    %v641 = vld [vmem:[#allocation5 + $0x6c8] sm:$0xff]
    %v642 = vld [vmem:[#allocation5 + $0x6d0] sm:$0xff]
    %v643 = vld [vmem:[#allocation5 + $0x6d8] sm:$0xff]
    %v644 = vld [vmem:[#allocation5 + $0x6e0] sm:$0xff]
    %v645 = vld [vmem:[#allocation5 + $0x6e8] sm:$0xff]
    %v646 = vld [vmem:[#allocation5 + $0x6f0] sm:$0xff]
    %v647 = vld [vmem:[#allocation5 + $0x6f8] sm:$0xff]
    %v648 = vld [vmem:[#allocation5 + $0x700] sm:$0xff]
    %v649 = vld [vmem:[#allocation5 + $0x708] sm:$0xff]
    %v650 = vld [vmem:[#allocation5 + $0x710] sm:$0xff]
    %v651 = vld [vmem:[#allocation5 + $0x718] sm:$0xff]
    %v652 = vld [vmem:[#allocation5 + $0x720] sm:$0xff]
    %v653 = vld [vmem:[#allocation5 + $0x728] sm:$0xff]
    %v654 = vld [vmem:[#allocation5 + $0x730] sm:$0xff]
    %v655 = vld [vmem:[#allocation5 + $0x738] sm:$0xff]
    %v656 = vld [vmem:[#allocation5 + $0x740] sm:$0xff]
    %v657 = vld [vmem:[#allocation5 + $0x748] sm:$0xff]
    %v658 = vld [vmem:[#allocation5 + $0x750] sm:$0xff]
    %v659 = vld [vmem:[#allocation5 + $0x758] sm:$0xff]
    %v660 = vld [vmem:[#allocation5 + $0x760] sm:$0xff]
    %v661 = vld [vmem:[#allocation5 + $0x768] sm:$0xff]
    %v662 = vld [vmem:[#allocation5 + $0x770] sm:$0xff]
    %v663 = vld [vmem:[#allocation5 + $0x778] sm:$0xff]
    %v664 = vld [vmem:[#allocation5 + $0x780] sm:$0xff]
    %v665 = vld [vmem:[#allocation5 + $0x788] sm:$0xff]
    %v666 = vld [vmem:[#allocation5 + $0x790] sm:$0xff]
    %v667 = vld [vmem:[#allocation5 + $0x798] sm:$0xff]
    %v668 = vld [vmem:[#allocation5 + $0x7a0] sm:$0xff]
    %v669 = vld [vmem:[#allocation5 + $0x7a8] sm:$0xff]
    %v670 = vld [vmem:[#allocation5 + $0x7b0] sm:$0xff]
    %v671 = vld [vmem:[#allocation5 + $0x7b8] sm:$0xff]
    %v672 = vld [vmem:[#allocation5 + $0x7c0] sm:$0xff]
    %v673 = vld [vmem:[#allocation5 + $0x7c8] sm:$0xff]
    %v674 = vld [vmem:[#allocation5 + $0x7d0] sm:$0xff]
    %v675 = vld [vmem:[#allocation5 + $0x7d8] sm:$0xff]
    %v676 = vld [vmem:[#allocation5 + $0x7e0] sm:$0xff]
    %v677 = vld [vmem:[#allocation5 + $0x7e8] sm:$0xff]
    %v678 = vld [vmem:[#allocation5 + $0x7f0] sm:$0xff]
    %v679 = vld [vmem:[#allocation5 + $0x7f8] sm:$0xff]
    %vm712 = vcmask 1041409
    %v713 = vsel %vm712, %v408, %v392
    %v714 = vsel %vm712, %v409, %v393
    %v715 = vsel %vm712, %v410, %v394
    %v716 = vsel %vm712, %v411, %v395
    %v717 = vsel %vm712, %v412, %v396
    %v718 = vsel %vm712, %v413, %v397
    %v719 = vsel %vm712, %v414, %v398
    %v720 = vsel %vm712, %v415, %v399
    %v721 = vsel %vm712, %v416, %v400
    %v722 = vsel %vm712, %v417, %v401
    %v723 = vsel %vm712, %v418, %v402
    %v724 = vsel %vm712, %v419, %v403
    %v725 = vsel %vm712, %v420, %v404
    %v726 = vsel %vm712, %v421, %v405
    %v727 = vsel %vm712, %v422, %v406
    %v728 = vsel %vm712, %v423, %v407
    %745 = vmatprep.subr.mxu0 0.0
    %746 = vmatpush1.msra.mxu0 %v424
    %747 = vmatprep.subr.mxu0 0.0
    %748 = vmatpush1.msra.mxu0 %v425
    %749 = vmatprep.subr.mxu0 0.0
    %750 = vmatpush1.msra.mxu0 %v426
    %751 = vmatprep.subr.mxu0 0.0
    %752 = vmatpush1.msra.mxu0 %v427
    %753 = vmatprep.subr.mxu0 0.0
    %754 = vmatpush1.msra.mxu0 %v428
    %755 = vmatprep.subr.mxu0 0.0
    %756 = vmatpush1.msra.mxu0 %v429
    %757 = vmatprep.subr.mxu0 0.0
    %758 = vmatpush1.msra.mxu0 %v430
    %759 = vmatprep.subr.mxu0 0.0
    %760 = vmatpush1.msra.mxu0 %v431
    %761 = vmatprep.subr.mxu0 0.0
    %762 = vmatpush1.msra.mxu0 %v432
    %763 = vmatprep.subr.mxu0 0.0
    %764 = vmatpush1.msra.mxu0 %v433
    %765 = vmatprep.subr.mxu0 0.0
    %766 = vmatpush1.msra.mxu0 %v434
    %767 = vmatprep.subr.mxu0 0.0
    %768 = vmatpush1.msra.mxu0 %v435
    %769 = vmatprep.subr.mxu0 0.0
    %770 = vmatpush1.msra.mxu0 %v436
    %771 = vmatprep.subr.mxu0 0.0
    %772 = vmatpush1.msra.mxu0 %v437
    %773 = vmatprep.subr.mxu0 0.0
    %774 = vmatpush1.msra.mxu0 %v438
    %775 = vmatprep.subr.mxu0 0.0
    %776 = vmatpush1.msra.mxu0 %v439
    %777 = vmatprep.subr.mxu0 0.0
    %778 = vmatpush1.msra.mxu0 %v440
    %779 = vmatprep.subr.mxu0 0.0
    %780 = vmatpush1.msra.mxu0 %v441
    %781 = vmatprep.subr.mxu0 0.0
    %782 = vmatpush1.msra.mxu0 %v442
    %783 = vmatprep.subr.mxu0 0.0
    %784 = vmatpush1.msra.mxu0 %v443
    %785 = vmatprep.subr.mxu0 0.0
    %786 = vmatpush1.msra.mxu0 %v444
    %787 = vmatprep.subr.mxu0 0.0
    %788 = vmatpush1.msra.mxu0 %v445
    %789 = vmatprep.subr.mxu0 0.0
    %790 = vmatpush1.msra.mxu0 %v446
    %791 = vmatprep.subr.mxu0 0.0
    %792 = vmatpush1.msra.mxu0 %v447
    %793 = vmatprep.subr.mxu0 0.0
    %794 = vmatpush1.msra.mxu0 %v448
    %795 = vmatprep.subr.mxu0 0.0
    %796 = vmatpush1.msra.mxu0 %v449
    %797 = vmatprep.subr.mxu0 0.0
    %798 = vmatpush1.msra.mxu0 %v450
    %799 = vmatprep.subr.mxu0 0.0
    %800 = vmatpush1.msra.mxu0 %v451
    %801 = vmatprep.subr.mxu0 0.0
    %802 = vmatpush1.msra.mxu0 %v452
    %803 = vmatprep.subr.mxu0 0.0
    %804 = vmatpush1.msra.mxu0 %v453
    %805 = vmatprep.subr.mxu0 0.0
    %806 = vmatpush1.msra.mxu0 %v454
    %807 = vmatprep.subr.mxu0 0.0
    %808 = vmatpush1.msra.mxu0 %v455
    %809 = vmatprep.mubr.f32.mxu0 %v714
    %810 = vmatmul.mubr.f32.gmra.mrb[0].mxu0 %v713
    %v811 = vpop.f32.mrb[0].mxu0
    %v812 = vadd.f32 0.0, %v811
    %v813 = vpop.f32.mrb[0].mxu0
    %814 = vdwg.mxu0
    %815 = vmatprep.subr.mxu0 0.0
    %816 = vmatpush1.msra.mxu0 %v456
    %817 = vmatprep.subr.mxu0 0.0
    %818 = vmatpush1.msra.mxu0 %v457
    %819 = vmatprep.subr.mxu0 0.0
    %820 = vmatpush1.msra.mxu0 %v458
    %821 = vmatprep.subr.mxu0 0.0
    %822 = vmatpush1.msra.mxu0 %v459
    %823 = vmatprep.subr.mxu0 0.0
    %824 = vmatpush1.msra.mxu0 %v460
    %825 = vmatprep.subr.mxu0 0.0
    %826 = vmatpush1.msra.mxu0 %v461
    %827 = vmatprep.subr.mxu0 0.0
    %828 = vmatpush1.msra.mxu0 %v462
    %829 = vmatprep.subr.mxu0 0.0
    %830 = vmatpush1.msra.mxu0 %v463
    %831 = vmatprep.subr.mxu0 0.0
    %832 = vmatpush1.msra.mxu0 %v464
    %833 = vmatprep.subr.mxu0 0.0
    %834 = vmatpush1.msra.mxu0 %v465
    %835 = vmatprep.subr.mxu0 0.0
    %836 = vmatpush1.msra.mxu0 %v466
    %837 = vmatprep.subr.mxu0 0.0
    %838 = vmatpush1.msra.mxu0 %v467
    %839 = vmatprep.subr.mxu0 0.0
    %840 = vmatpush1.msra.mxu0 %v468
    %841 = vmatprep.subr.mxu0 0.0
    %842 = vmatpush1.msra.mxu0 %v469
    %843 = vmatprep.subr.mxu0 0.0
    %844 = vmatpush1.msra.mxu0 %v470
    %845 = vmatprep.subr.mxu0 0.0
    %846 = vmatpush1.msra.mxu0 %v471
    %847 = vmatprep.subr.mxu0 0.0
    %848 = vmatpush1.msra.mxu0 %v472
    %849 = vmatprep.subr.mxu0 0.0
    %850 = vmatpush1.msra.mxu0 %v473
    %851 = vmatprep.subr.mxu0 0.0
    %852 = vmatpush1.msra.mxu0 %v474
    %853 = vmatprep.subr.mxu0 0.0
    %854 = vmatpush1.msra.mxu0 %v475
    %855 = vmatprep.subr.mxu0 0.0
    %856 = vmatpush1.msra.mxu0 %v476
    %857 = vmatprep.subr.mxu0 0.0
    %858 = vmatpush1.msra.mxu0 %v477
    %859 = vmatprep.subr.mxu0 0.0
    %860 = vmatpush1.msra.mxu0 %v478
    %861 = vmatprep.subr.mxu0 0.0
    %862 = vmatpush1.msra.mxu0 %v479
    %863 = vmatprep.subr.mxu0 0.0
    %864 = vmatpush1.msra.mxu0 %v480
    %865 = vmatprep.subr.mxu0 0.0
    %866 = vmatpush1.msra.mxu0 %v481
    %867 = vmatprep.subr.mxu0 0.0
    %868 = vmatpush1.msra.mxu0 %v482
    %869 = vmatprep.subr.mxu0 0.0
    %870 = vmatpush1.msra.mxu0 %v483
    %871 = vmatprep.subr.mxu0 0.0
    %872 = vmatpush1.msra.mxu0 %v484
    %873 = vmatprep.subr.mxu0 0.0
    %874 = vmatpush1.msra.mxu0 %v485
    %875 = vmatprep.subr.mxu0 0.0
    %876 = vmatpush1.msra.mxu0 %v486
    %877 = vmatprep.subr.mxu0 0.0
    %878 = vmatpush1.msra.mxu0 %v487
    %879 = vmatprep.mubr.f32.mxu0 %v716
    %880 = vmatmul.mubr.f32.gmra.mrb[0].mxu0 %v715
    %v881 = vpop.f32.mrb[0].mxu0
    %v882 = vadd.f32 %v812, %v881
    %v883 = vpop.f32.mrb[0].mxu0
    %884 = vdwg.mxu0
    %885 = vmatprep.subr.mxu0 0.0
    %886 = vmatpush1.msra.mxu0 %v488
    %887 = vmatprep.subr.mxu0 0.0
    %888 = vmatpush1.msra.mxu0 %v489
    %889 = vmatprep.subr.mxu0 0.0
    %890 = vmatpush1.msra.mxu0 %v490
    %891 = vmatprep.subr.mxu0 0.0
    %892 = vmatpush1.msra.mxu0 %v491
    %893 = vmatprep.subr.mxu0 0.0
    %894 = vmatpush1.msra.mxu0 %v492
    %895 = vmatprep.subr.mxu0 0.0
    %896 = vmatpush1.msra.mxu0 %v493
    %897 = vmatprep.subr.mxu0 0.0
    %898 = vmatpush1.msra.mxu0 %v494
    %899 = vmatprep.subr.mxu0 0.0
    %900 = vmatpush1.msra.mxu0 %v495
    %901 = vmatprep.subr.mxu0 0.0
    %902 = vmatpush1.msra.mxu0 %v496
    %903 = vmatprep.subr.mxu0 0.0
    %904 = vmatpush1.msra.mxu0 %v497
    %905 = vmatprep.subr.mxu0 0.0
    %906 = vmatpush1.msra.mxu0 %v498
    %907 = vmatprep.subr.mxu0 0.0
    %908 = vmatpush1.msra.mxu0 %v499
    %909 = vmatprep.subr.mxu0 0.0
    %910 = vmatpush1.msra.mxu0 %v500
    %911 = vmatprep.subr.mxu0 0.0
    %912 = vmatpush1.msra.mxu0 %v501
    %913 = vmatprep.subr.mxu0 0.0
    %914 = vmatpush1.msra.mxu0 %v502
    %915 = vmatprep.subr.mxu0 0.0
    %916 = vmatpush1.msra.mxu0 %v503
    %917 = vmatprep.subr.mxu0 0.0
    %918 = vmatpush1.msra.mxu0 %v504
    %919 = vmatprep.subr.mxu0 0.0
    %920 = vmatpush1.msra.mxu0 %v505
    %921 = vmatprep.subr.mxu0 0.0
    %922 = vmatpush1.msra.mxu0 %v506
    %923 = vmatprep.subr.mxu0 0.0
    %924 = vmatpush1.msra.mxu0 %v507
    %925 = vmatprep.subr.mxu0 0.0
    %926 = vmatpush1.msra.mxu0 %v508
    %927 = vmatprep.subr.mxu0 0.0
    %928 = vmatpush1.msra.mxu0 %v509
    %929 = vmatprep.subr.mxu0 0.0
    %930 = vmatpush1.msra.mxu0 %v510
    %931 = vmatprep.subr.mxu0 0.0
    %932 = vmatpush1.msra.mxu0 %v511
    %933 = vmatprep.subr.mxu0 0.0
    %934 = vmatpush1.msra.mxu0 %v512
    %935 = vmatprep.subr.mxu0 0.0
    %936 = vmatpush1.msra.mxu0 %v513
    %937 = vmatprep.subr.mxu0 0.0
    %938 = vmatpush1.msra.mxu0 %v514
    %939 = vmatprep.subr.mxu0 0.0
    %940 = vmatpush1.msra.mxu0 %v515
    %941 = vmatprep.subr.mxu0 0.0
    %942 = vmatpush1.msra.mxu0 %v516
    %943 = vmatprep.subr.mxu0 0.0
    %944 = vmatpush1.msra.mxu0 %v517
    %945 = vmatprep.subr.mxu0 0.0
    %946 = vmatpush1.msra.mxu0 %v518
    %947 = vmatprep.subr.mxu0 0.0
    %948 = vmatpush1.msra.mxu0 %v519
    %949 = vmatprep.mubr.f32.mxu0 %v718
    %950 = vmatmul.mubr.f32.gmra.mrb[0].mxu0 %v717
    %v951 = vpop.f32.mrb[0].mxu0
    %v952 = vadd.f32 %v882, %v951
    %v953 = vpop.f32.mrb[0].mxu0
    %954 = vdwg.mxu0
    %955 = vmatprep.subr.mxu0 0.0
    %956 = vmatpush1.msra.mxu0 %v520
    %957 = vmatprep.subr.mxu0 0.0
    %958 = vmatpush1.msra.mxu0 %v521
    %959 = vmatprep.subr.mxu0 0.0
    %960 = vmatpush1.msra.mxu0 %v522
    %961 = vmatprep.subr.mxu0 0.0
    %962 = vmatpush1.msra.mxu0 %v523
    %963 = vmatprep.subr.mxu0 0.0
    %964 = vmatpush1.msra.mxu0 %v524
    %965 = vmatprep.subr.mxu0 0.0
    %966 = vmatpush1.msra.mxu0 %v525
    %967 = vmatprep.subr.mxu0 0.0
    %968 = vmatpush1.msra.mxu0 %v526
    %969 = vmatprep.subr.mxu0 0.0
    %970 = vmatpush1.msra.mxu0 %v527
    %971 = vmatprep.subr.mxu0 0.0
    %972 = vmatpush1.msra.mxu0 %v528
    %973 = vmatprep.subr.mxu0 0.0
    %974 = vmatpush1.msra.mxu0 %v529
    %975 = vmatprep.subr.mxu0 0.0
    %976 = vmatpush1.msra.mxu0 %v530
    %977 = vmatprep.subr.mxu0 0.0
    %978 = vmatpush1.msra.mxu0 %v531
    %979 = vmatprep.subr.mxu0 0.0
    %980 = vmatpush1.msra.mxu0 %v532
    %981 = vmatprep.subr.mxu0 0.0
    %982 = vmatpush1.msra.mxu0 %v533
    %983 = vmatprep.subr.mxu0 0.0
    %984 = vmatpush1.msra.mxu0 %v534
    %985 = vmatprep.subr.mxu0 0.0
    %986 = vmatpush1.msra.mxu0 %v535
    %987 = vmatprep.subr.mxu0 0.0
    %988 = vmatpush1.msra.mxu0 %v536
    %989 = vmatprep.subr.mxu0 0.0
    %990 = vmatpush1.msra.mxu0 %v537
    %991 = vmatprep.subr.mxu0 0.0
    %992 = vmatpush1.msra.mxu0 %v538
    %993 = vmatprep.subr.mxu0 0.0
    %994 = vmatpush1.msra.mxu0 %v539
    %995 = vmatprep.subr.mxu0 0.0
    %996 = vmatpush1.msra.mxu0 %v540
    %997 = vmatprep.subr.mxu0 0.0
    %998 = vmatpush1.msra.mxu0 %v541
    %999 = vmatprep.subr.mxu0 0.0
    %1000 = vmatpush1.msra.mxu0 %v542
    %1001 = vmatprep.subr.mxu0 0.0
    %1002 = vmatpush1.msra.mxu0 %v543
    %1003 = vmatprep.subr.mxu0 0.0
    %1004 = vmatpush1.msra.mxu0 %v544
    %1005 = vmatprep.subr.mxu0 0.0
    %1006 = vmatpush1.msra.mxu0 %v545
    %1007 = vmatprep.subr.mxu0 0.0
    %1008 = vmatpush1.msra.mxu0 %v546
    %1009 = vmatprep.subr.mxu0 0.0
    %1010 = vmatpush1.msra.mxu0 %v547
    %1011 = vmatprep.subr.mxu0 0.0
    %1012 = vmatpush1.msra.mxu0 %v548
    %1013 = vmatprep.subr.mxu0 0.0
    %1014 = vmatpush1.msra.mxu0 %v549
    %1015 = vmatprep.subr.mxu0 0.0
    %1016 = vmatpush1.msra.mxu0 %v550
    %1017 = vmatprep.subr.mxu0 0.0
    %1018 = vmatpush1.msra.mxu0 %v551
    %1019 = vmatprep.mubr.f32.mxu0 %v720
    %1020 = vmatmul.mubr.f32.gmra.mrb[0].mxu0 %v719
    %v1021 = vpop.f32.mrb[0].mxu0
    %v1022 = vadd.f32 %v952, %v1021
    %v1023 = vpop.f32.mrb[0].mxu0
    %1024 = vdwg.mxu0
    %1025 = vmatprep.subr.mxu0 0.0
    %1026 = vmatpush1.msra.mxu0 %v552
    %1027 = vmatprep.subr.mxu0 0.0
    %1028 = vmatpush1.msra.mxu0 %v553
    %1029 = vmatprep.subr.mxu0 0.0
    %1030 = vmatpush1.msra.mxu0 %v554
    %1031 = vmatprep.subr.mxu0 0.0
    %1032 = vmatpush1.msra.mxu0 %v555
    %1033 = vmatprep.subr.mxu0 0.0
    %1034 = vmatpush1.msra.mxu0 %v556
    %1035 = vmatprep.subr.mxu0 0.0
    %1036 = vmatpush1.msra.mxu0 %v557
    %1037 = vmatprep.subr.mxu0 0.0
    %1038 = vmatpush1.msra.mxu0 %v558
    %1039 = vmatprep.subr.mxu0 0.0
    %1040 = vmatpush1.msra.mxu0 %v559
    %1041 = vmatprep.subr.mxu0 0.0
    %1042 = vmatpush1.msra.mxu0 %v560
    %1043 = vmatprep.subr.mxu0 0.0
    %1044 = vmatpush1.msra.mxu0 %v561
    %1045 = vmatprep.subr.mxu0 0.0
    %1046 = vmatpush1.msra.mxu0 %v562
    %1047 = vmatprep.subr.mxu0 0.0
    %1048 = vmatpush1.msra.mxu0 %v563
    %1049 = vmatprep.subr.mxu0 0.0
    %1050 = vmatpush1.msra.mxu0 %v564
    %1051 = vmatprep.subr.mxu0 0.0
    %1052 = vmatpush1.msra.mxu0 %v565
    %1053 = vmatprep.subr.mxu0 0.0
    %1054 = vmatpush1.msra.mxu0 %v566
    %1055 = vmatprep.subr.mxu0 0.0
    %1056 = vmatpush1.msra.mxu0 %v567
    %1057 = vmatprep.subr.mxu0 0.0
    %1058 = vmatpush1.msra.mxu0 %v568
    %1059 = vmatprep.subr.mxu0 0.0
    %1060 = vmatpush1.msra.mxu0 %v569
    %1061 = vmatprep.subr.mxu0 0.0
    %1062 = vmatpush1.msra.mxu0 %v570
    %1063 = vmatprep.subr.mxu0 0.0
    %1064 = vmatpush1.msra.mxu0 %v571
    %1065 = vmatprep.subr.mxu0 0.0
    %1066 = vmatpush1.msra.mxu0 %v572
    %1067 = vmatprep.subr.mxu0 0.0
    %1068 = vmatpush1.msra.mxu0 %v573
    %1069 = vmatprep.subr.mxu0 0.0
    %1070 = vmatpush1.msra.mxu0 %v574
    %1071 = vmatprep.subr.mxu0 0.0
    %1072 = vmatpush1.msra.mxu0 %v575
    %1073 = vmatprep.subr.mxu0 0.0
    %1074 = vmatpush1.msra.mxu0 %v576
    %1075 = vmatprep.subr.mxu0 0.0
    %1076 = vmatpush1.msra.mxu0 %v577
    %1077 = vmatprep.subr.mxu0 0.0
    %1078 = vmatpush1.msra.mxu0 %v578
    %1079 = vmatprep.subr.mxu0 0.0
    %1080 = vmatpush1.msra.mxu0 %v579
    %1081 = vmatprep.subr.mxu0 0.0
    %1082 = vmatpush1.msra.mxu0 %v580
    %1083 = vmatprep.subr.mxu0 0.0
    %1084 = vmatpush1.msra.mxu0 %v581
    %1085 = vmatprep.subr.mxu0 0.0
    %1086 = vmatpush1.msra.mxu0 %v582
    %1087 = vmatprep.subr.mxu0 0.0
    %1088 = vmatpush1.msra.mxu0 %v583
    %1089 = vmatprep.mubr.f32.mxu0 %v722
    %1090 = vmatmul.mubr.f32.gmra.mrb[0].mxu0 %v721
    %v1091 = vpop.f32.mrb[0].mxu0
    %v1092 = vadd.f32 %v1022, %v1091
    %v1093 = vpop.f32.mrb[0].mxu0
    %1094 = vdwg.mxu0
    %1095 = vmatprep.subr.mxu0 0.0
    %1096 = vmatpush1.msra.mxu0 %v584
    %1097 = vmatprep.subr.mxu0 0.0
    %1098 = vmatpush1.msra.mxu0 %v585
    %1099 = vmatprep.subr.mxu0 0.0
    %1100 = vmatpush1.msra.mxu0 %v586
    %1101 = vmatprep.subr.mxu0 0.0
    %1102 = vmatpush1.msra.mxu0 %v587
    %1103 = vmatprep.subr.mxu0 0.0
    %1104 = vmatpush1.msra.mxu0 %v588
    %1105 = vmatprep.subr.mxu0 0.0
    %1106 = vmatpush1.msra.mxu0 %v589
    %1107 = vmatprep.subr.mxu0 0.0
    %1108 = vmatpush1.msra.mxu0 %v590
    %1109 = vmatprep.subr.mxu0 0.0
    %1110 = vmatpush1.msra.mxu0 %v591
    %1111 = vmatprep.subr.mxu0 0.0
    %1112 = vmatpush1.msra.mxu0 %v592
    %1113 = vmatprep.subr.mxu0 0.0
    %1114 = vmatpush1.msra.mxu0 %v593
    %1115 = vmatprep.subr.mxu0 0.0
    %1116 = vmatpush1.msra.mxu0 %v594
    %1117 = vmatprep.subr.mxu0 0.0
    %1118 = vmatpush1.msra.mxu0 %v595
    %1119 = vmatprep.subr.mxu0 0.0
    %1120 = vmatpush1.msra.mxu0 %v596
    %1121 = vmatprep.subr.mxu0 0.0
    %1122 = vmatpush1.msra.mxu0 %v597
    %1123 = vmatprep.subr.mxu0 0.0
    %1124 = vmatpush1.msra.mxu0 %v598
    %1125 = vmatprep.subr.mxu0 0.0
    %1126 = vmatpush1.msra.mxu0 %v599
    %1127 = vmatprep.subr.mxu0 0.0
    %1128 = vmatpush1.msra.mxu0 %v600
    %1129 = vmatprep.subr.mxu0 0.0
    %1130 = vmatpush1.msra.mxu0 %v601
    %1131 = vmatprep.subr.mxu0 0.0
    %1132 = vmatpush1.msra.mxu0 %v602
    %1133 = vmatprep.subr.mxu0 0.0
    %1134 = vmatpush1.msra.mxu0 %v603
    %1135 = vmatprep.subr.mxu0 0.0
    %1136 = vmatpush1.msra.mxu0 %v604
    %1137 = vmatprep.subr.mxu0 0.0
    %1138 = vmatpush1.msra.mxu0 %v605
    %1139 = vmatprep.subr.mxu0 0.0
    %1140 = vmatpush1.msra.mxu0 %v606
    %1141 = vmatprep.subr.mxu0 0.0
    %1142 = vmatpush1.msra.mxu0 %v607
    %1143 = vmatprep.subr.mxu0 0.0
    %1144 = vmatpush1.msra.mxu0 %v608
    %1145 = vmatprep.subr.mxu0 0.0
    %1146 = vmatpush1.msra.mxu0 %v609
    %1147 = vmatprep.subr.mxu0 0.0
    %1148 = vmatpush1.msra.mxu0 %v610
    %1149 = vmatprep.subr.mxu0 0.0
    %1150 = vmatpush1.msra.mxu0 %v611
    %1151 = vmatprep.subr.mxu0 0.0
    %1152 = vmatpush1.msra.mxu0 %v612
    %1153 = vmatprep.subr.mxu0 0.0
    %1154 = vmatpush1.msra.mxu0 %v613
    %1155 = vmatprep.subr.mxu0 0.0
    %1156 = vmatpush1.msra.mxu0 %v614
    %1157 = vmatprep.subr.mxu0 0.0
    %1158 = vmatpush1.msra.mxu0 %v615
    %1159 = vmatprep.mubr.f32.mxu0 %v724
    %1160 = vmatmul.mubr.f32.gmra.mrb[0].mxu0 %v723
    %v1161 = vpop.f32.mrb[0].mxu0
    %v1162 = vadd.f32 %v1092, %v1161
    %v1163 = vpop.f32.mrb[0].mxu0
    %1164 = vdwg.mxu0
    %1165 = vmatprep.subr.mxu0 0.0
    %1166 = vmatpush1.msra.mxu0 %v616
    %1167 = vmatprep.subr.mxu0 0.0
    %1168 = vmatpush1.msra.mxu0 %v617
    %1169 = vmatprep.subr.mxu0 0.0
    %1170 = vmatpush1.msra.mxu0 %v618
    %1171 = vmatprep.subr.mxu0 0.0
    %1172 = vmatpush1.msra.mxu0 %v619
    %1173 = vmatprep.subr.mxu0 0.0
    %1174 = vmatpush1.msra.mxu0 %v620
    %1175 = vmatprep.subr.mxu0 0.0
    %1176 = vmatpush1.msra.mxu0 %v621
    %1177 = vmatprep.subr.mxu0 0.0
    %1178 = vmatpush1.msra.mxu0 %v622
    %1179 = vmatprep.subr.mxu0 0.0
    %1180 = vmatpush1.msra.mxu0 %v623
    %1181 = vmatprep.subr.mxu0 0.0
    %1182 = vmatpush1.msra.mxu0 %v624
    %1183 = vmatprep.subr.mxu0 0.0
    %1184 = vmatpush1.msra.mxu0 %v625
    %1185 = vmatprep.subr.mxu0 0.0
    %1186 = vmatpush1.msra.mxu0 %v626
    %1187 = vmatprep.subr.mxu0 0.0
    %1188 = vmatpush1.msra.mxu0 %v627
    %1189 = vmatprep.subr.mxu0 0.0
    %1190 = vmatpush1.msra.mxu0 %v628
    %1191 = vmatprep.subr.mxu0 0.0
    %1192 = vmatpush1.msra.mxu0 %v629
    %1193 = vmatprep.subr.mxu0 0.0
    %1194 = vmatpush1.msra.mxu0 %v630
    %1195 = vmatprep.subr.mxu0 0.0
    %1196 = vmatpush1.msra.mxu0 %v631
    %1197 = vmatprep.subr.mxu0 0.0
    %1198 = vmatpush1.msra.mxu0 %v632
    %1199 = vmatprep.subr.mxu0 0.0
    %1200 = vmatpush1.msra.mxu0 %v633
    %1201 = vmatprep.subr.mxu0 0.0
    %1202 = vmatpush1.msra.mxu0 %v634
    %1203 = vmatprep.subr.mxu0 0.0
    %1204 = vmatpush1.msra.mxu0 %v635
    %1205 = vmatprep.subr.mxu0 0.0
    %1206 = vmatpush1.msra.mxu0 %v636
    %1207 = vmatprep.subr.mxu0 0.0
    %1208 = vmatpush1.msra.mxu0 %v637
    %1209 = vmatprep.subr.mxu0 0.0
    %1210 = vmatpush1.msra.mxu0 %v638
    %1211 = vmatprep.subr.mxu0 0.0
    %1212 = vmatpush1.msra.mxu0 %v639
    %1213 = vmatprep.subr.mxu0 0.0
    %1214 = vmatpush1.msra.mxu0 %v640
    %1215 = vmatprep.subr.mxu0 0.0
    %1216 = vmatpush1.msra.mxu0 %v641
    %1217 = vmatprep.subr.mxu0 0.0
    %1218 = vmatpush1.msra.mxu0 %v642
    %1219 = vmatprep.subr.mxu0 0.0
    %1220 = vmatpush1.msra.mxu0 %v643
    %1221 = vmatprep.subr.mxu0 0.0
    %1222 = vmatpush1.msra.mxu0 %v644
    %1223 = vmatprep.subr.mxu0 0.0
    %1224 = vmatpush1.msra.mxu0 %v645
    %1225 = vmatprep.subr.mxu0 0.0
    %1226 = vmatpush1.msra.mxu0 %v646
    %1227 = vmatprep.subr.mxu0 0.0
    %1228 = vmatpush1.msra.mxu0 %v647
    %1229 = vmatprep.mubr.f32.mxu0 %v726
    %1230 = vmatmul.mubr.f32.gmra.mrb[0].mxu0 %v725
    %v1231 = vpop.f32.mrb[0].mxu0
    %v1232 = vadd.f32 %v1162, %v1231
    %v1233 = vpop.f32.mrb[0].mxu0
    %1234 = vdwg.mxu0
    %1235 = vmatprep.subr.mxu0 0.0
    %1236 = vmatpush1.msra.mxu0 %v648
    %1237 = vmatprep.subr.mxu0 0.0
    %1238 = vmatpush1.msra.mxu0 %v649
    %1239 = vmatprep.subr.mxu0 0.0
    %1240 = vmatpush1.msra.mxu0 %v650
    %1241 = vmatprep.subr.mxu0 0.0
    %1242 = vmatpush1.msra.mxu0 %v651
    %1243 = vmatprep.subr.mxu0 0.0
    %1244 = vmatpush1.msra.mxu0 %v652
    %1245 = vmatprep.subr.mxu0 0.0
    %1246 = vmatpush1.msra.mxu0 %v653
    %1247 = vmatprep.subr.mxu0 0.0
    %1248 = vmatpush1.msra.mxu0 %v654
    %1249 = vmatprep.subr.mxu0 0.0
    %1250 = vmatpush1.msra.mxu0 %v655
    %1251 = vmatprep.subr.mxu0 0.0
    %1252 = vmatpush1.msra.mxu0 %v656
    %1253 = vmatprep.subr.mxu0 0.0
    %1254 = vmatpush1.msra.mxu0 %v657
    %1255 = vmatprep.subr.mxu0 0.0
    %1256 = vmatpush1.msra.mxu0 %v658
    %1257 = vmatprep.subr.mxu0 0.0
    %1258 = vmatpush1.msra.mxu0 %v659
    %1259 = vmatprep.subr.mxu0 0.0
    %1260 = vmatpush1.msra.mxu0 %v660
    %1261 = vmatprep.subr.mxu0 0.0
    %1262 = vmatpush1.msra.mxu0 %v661
    %1263 = vmatprep.subr.mxu0 0.0
    %1264 = vmatpush1.msra.mxu0 %v662
    %1265 = vmatprep.subr.mxu0 0.0
    %1266 = vmatpush1.msra.mxu0 %v663
    %1267 = vmatprep.subr.mxu0 0.0
    %1268 = vmatpush1.msra.mxu0 %v664
    %1269 = vmatprep.subr.mxu0 0.0
    %1270 = vmatpush1.msra.mxu0 %v665
    %1271 = vmatprep.subr.mxu0 0.0
    %1272 = vmatpush1.msra.mxu0 %v666
    %1273 = vmatprep.subr.mxu0 0.0
    %1274 = vmatpush1.msra.mxu0 %v667
    %1275 = vmatprep.subr.mxu0 0.0
    %1276 = vmatpush1.msra.mxu0 %v668
    %1277 = vmatprep.subr.mxu0 0.0
    %1278 = vmatpush1.msra.mxu0 %v669
    %1279 = vmatprep.subr.mxu0 0.0
    %1280 = vmatpush1.msra.mxu0 %v670
    %1281 = vmatprep.subr.mxu0 0.0
    %1282 = vmatpush1.msra.mxu0 %v671
    %1283 = vmatprep.subr.mxu0 0.0
    %1284 = vmatpush1.msra.mxu0 %v672
    %1285 = vmatprep.subr.mxu0 0.0
    %1286 = vmatpush1.msra.mxu0 %v673
    %1287 = vmatprep.subr.mxu0 0.0
    %1288 = vmatpush1.msra.mxu0 %v674
    %1289 = vmatprep.subr.mxu0 0.0
    %1290 = vmatpush1.msra.mxu0 %v675
    %1291 = vmatprep.subr.mxu0 0.0
    %1292 = vmatpush1.msra.mxu0 %v676
    %1293 = vmatprep.subr.mxu0 0.0
    %1294 = vmatpush1.msra.mxu0 %v677
    %1295 = vmatprep.subr.mxu0 0.0
    %1296 = vmatpush1.msra.mxu0 %v678
    %1297 = vmatprep.subr.mxu0 0.0
    %1298 = vmatpush1.msra.mxu0 %v679
    %1299 = vmatprep.mubr.f32.mxu0 %v728
    %1300 = vmatmul.mubr.f32.gmra.mrb[0].mxu0 %v727
    %v1301 = vpop.f32.mrb[0].mxu0
    %v1302 = vadd.f32 %v1232, %v1301
    %v1303 = vpop.f32.mrb[0].mxu0
    %1304 = vdwg.mxu0
    %1305 = vst [vmem:[#allocation7] sm:$0x3] %v1302
    // Predicated region
    $region18: #{tpu_custom_call.1} parent=1 // pred_check
      _
    $region19: #{tpu_custom_call.1} parent=1 // pred_check_branch
      %1307 = sbr.rel (0) target = $region21
    $region20: #{tpu_custom_call.1} parent=1 // pred_region
      %s1309 = ssub.s32 32, 32
      %1310 = vsyncadd [#allocation4], %s1309
      %s1312 = sshll.u32 [#allocation7], 4
      %s1313 = int_to_ptr.vmem [resolvable:$true] %s1312
      %1315 = dma.vmem_to_hbm [thread:$0]  %s1313, 32, %s2, [#allocation4]
    $region21: #{tpu_custom_call.1} parent=1 // pred_fallthru
      _
    // Predicated region
    $region22: #{tpu_custom_call.1} parent=1 // pred_check
      _
    $region23: #{tpu_custom_call.1} parent=1 // pred_check_branch
      %1317 = sbr.rel (0) target = $region25
    $region24: #{tpu_custom_call.1} parent=1 // pred_region
      %1318 = dma.done [#allocation4], 32
    $region25: #{tpu_custom_call.1} parent=1 // pred_fallthru
      _
    %1319 = vsyncpa [#allocation3], 1
    %1320 = vsyncpa [#allocation6], 1
    %1321 = vsyncpa [#allocation4], 1

</llo_original>
